<compile_context>
chip_gen: v7x
topology: tpu7x:2x2x1
jax: 0.10.0
libtpu: 0.0.40
codegen_flags: <defaults>
</compile_context>

<pallas_src>
import math

import numpy as np
import jax
import jax.numpy as jnp
from jax.experimental import pallas as pl
from jax.experimental.pallas import tpu as pltpu

NUM_QUBITS = 4
NUM_QREPS = 2
DIM = 2 ** NUM_QUBITS          # 16
SDIM = 2 * DIM                 # 32  lanes: [Re(psi0) | Im(psi0)]
KDIM = NUM_QUBITS * SDIM       # 128 lanes: fused RHS width (exactly lane-dense)


def _round_up(v, m):
    return ((v + m - 1) // m) * m


# ----------------------- glue: constant gate / observable matrices -----------------------

def _rz(a):
    return np.array([[np.exp(-0.5j * a), 0.0], [0.0, np.exp(0.5j * a)]], dtype=np.complex128)


def _ry(a):
    c, s = np.cos(0.5 * a), np.sin(0.5 * a)
    return np.array([[c, -s], [s, c]], dtype=np.complex128)


def _rot(phi, theta, omega):
    # qml.Rot(phi, theta, omega) == RZ(omega) @ RY(theta) @ RZ(phi)
    return _rz(omega) @ _ry(theta) @ _rz(phi)


def _single_qubit_full(gate2, wire, n):
    # wire 0 is the most-significant bit (PennyLane basis ordering)
    return np.kron(np.eye(2 ** wire), np.kron(gate2, np.eye(2 ** (n - 1 - wire))))


def _cnot_full(control, target, n):
    D = 2 ** n
    M = np.zeros((D, D), dtype=np.complex128)
    for s in range(D):
        bc = (s >> (n - 1 - control)) & 1
        sp = s ^ (bc << (n - 1 - target))
        M[sp, s] = 1.0
    return M


def build_sel_unitary(weights, n):
    """StronglyEntanglingLayers unitary; weights: (L, n, 3), imprimitive=CNOT,
    default ranges r_l = (l mod (n-1)) + 1."""
    L = weights.shape[0]
    U = np.eye(2 ** n, dtype=np.complex128)
    for l in range(L):
        for w in range(n):
            g = _rot(weights[l, w, 0], weights[l, w, 1], weights[l, w, 2])
            U = _single_qubit_full(g, w, n) @ U
        if n > 1:
            r = (l % (n - 1)) + 1
            for w in range(n):
                U = _cnot_full(w, (w + r) % n, n) @ U
    return U


def build_pauli_y_antisym(n):
    """Y_i = i * A_i with A_i real antisymmetric; returns (n, D, D)."""
    D = 2 ** n
    A = np.zeros((n, D, D), dtype=np.float64)
    for i in range(n):
        bit = 1 << (n - 1 - i)
        for s in range(D):
            sp = s ^ bit
            A[i, sp, s] = -1.0 if (s & bit) else 1.0
    return A


def build_qlayer_constants(weights):
    """Fold unitary + observables into the constants the kernel consumes.

    Returns (cmask, smask, sgn, G, M):
      cmask/smask (n, 2D)  : per-wire cos/sin selectors for the product-state build
      sgn         (1, 2D)  : (-i)^popcount real/imag signs -> S = [Re psi0 | Im psi0]
      G           (2D, n*2D): [G_0 | ... | G_{n-1}],  G_q = [[Hr,-Hi],[Hi,Hr]],  H_q = U^dag Y_q U
      M           (n*2D, n): segment-sum matrix (sum each 2D-wide block into column q)
    """
    n, D = NUM_QUBITS, DIM
    U = build_sel_unitary(np.asarray(weights, dtype=np.float64), n)
    A = build_pauli_y_antisym(n)

    g_blocks = []
    for q in range(n):
        H = U.conj().T @ (1j * A[q]) @ U          # Hermitian D x D
        Hr, Hi = H.real, H.imag
        g_blocks.append(np.block([[Hr, -Hi], [Hi, Hr]]))   # (2D, 2D)
    G = np.concatenate(g_blocks, axis=1)          # (2D, n*2D) = (32, 128)

    M = np.zeros((n * 2 * D, n), dtype=np.float64)
    for q in range(n):
        M[q * 2 * D:(q + 1) * 2 * D, q] = 1.0

    cmask = np.zeros((n, 2 * D), dtype=np.float64)
    for j in range(n):
        for k in range(2 * D):
            bit = ((k % D) >> (n - 1 - j)) & 1
            cmask[j, k] = 1.0 if bit == 0 else 0.0
    smask = 1.0 - cmask

    sgn = np.zeros((1, 2 * D), dtype=np.float64)  # (-i)^popcount split into real/imag planes
    for k in range(2 * D):
        p = bin(k % D).count("1")
        if k < D:   # real plane
            sgn[0, k] = 1.0 if p % 4 == 0 else (-1.0 if p % 4 == 2 else 0.0)
        else:       # imag plane
            sgn[0, k] = -1.0 if p % 4 == 1 else (1.0 if p % 4 == 3 else 0.0)

    to = lambda a: jnp.asarray(a, dtype=jnp.float32)
    return to(cmask), to(smask), to(sgn), to(G), to(M)


# ----------------------------------- Pallas kernel --------------------------------------

def qlayer_kernel(x_ref, cmask_ref, smask_ref, sgn_ref, g_ref, m_ref, out_ref):
    # x_ref: (TILE_B, n) angles; everything else is a small VMEM-resident constant.
    half = 0.5 * x_ref[...]
    c = jnp.cos(half)                                   # (tb, n)  EUP
    s = jnp.sin(half)                                   # (tb, n)  EUP

    # Fused AngleEmbedding: product-state magnitudes on the duplicated [Re | Im] lane layout.
    factors = []
    for j in range(NUM_QUBITS):                          # static, unrolled
        cj = c[:, j:j + 1]                               # (tb, 1)
        sj = s[:, j:j + 1]
        factors.append(cj * cmask_ref[j:j + 1, :] + sj * smask_ref[j:j + 1, :])  # (tb, 32)
    mag = factors[0]
    for f in factors[1:]:
        mag = mag * f
    S = mag * sgn_ref[...]                               # (tb, 32) = [Re psi0 | Im psi0]

    # One lane-dense MXU pass: all observables at once.
    Z = jnp.dot(S, g_ref[...], preferred_element_type=jnp.float32)       # (tb, 128)
    P = Z * jnp.tile(S, (1, NUM_QUBITS))                                  # (tb, 128) VPU
    # Segment-sum each 32-lane block -> <Y_q>; tiny second MXU pass, single store.
    out_ref[...] = jnp.dot(P, m_ref[...], preferred_element_type=jnp.float32)  # (tb, n)


@jax.jit
def qlayer_forward(x, cmask, smask, sgn, G, M):
    B = x.shape[0]
    tile_b = min(512, _round_up(max(B, 1), 8))           # big batch tiles; (8,·) aligned
    Bp = _round_up(B, tile_b)
    if Bp != B:
        x = jnp.pad(x, ((0, Bp - B), (0, 0)))
    grid = (Bp // tile_b,)

    const = lambda shape: pl.BlockSpec(shape, lambda i: (0, 0))   # stays VMEM-resident
    out = pl.pallas_call(
        qlayer_kernel,
        out_shape=jax.ShapeDtypeStruct((Bp, NUM_QUBITS), jnp.float32),
        grid=grid,
        in_specs=[
            pl.BlockSpec((tile_b, NUM_QUBITS), lambda i: (i, 0)),
            const((NUM_QUBITS, SDIM)),
            const((NUM_QUBITS, SDIM)),
            const((1, SDIM)),
            const((SDIM, KDIM)),
            const((KDIM, NUM_QUBITS)),
        ],
        out_specs=pl.BlockSpec((tile_b, NUM_QUBITS), lambda i: (i, 0)),
        compiler_params=pltpu.CompilerParams(dimension_semantics=("parallel",)),
    )(x, cmask, smask, sgn, G, M)
    return out[:B]


# ------------------------------------- reference ----------------------------------------

def angle_embed_state(x):
    """AngleEmbedding(rotation='X') applied to |0...0>: product state per batch row."""
    B, n = x.shape
    state = jnp.ones((B, 1), dtype=jnp.complex64)
    half = 0.5 * x.astype(jnp.float32)
    for j in range(n):
        c = jnp.cos(half[:, j]).astype(jnp.complex64)
        s = (-1j) * jnp.sin(half[:, j]).astype(jnp.complex64)
        v = jnp.stack([c, s], axis=-1)                    # RX(x)|0> = [cos, -i sin]
        state = (state[:, :, None] * v[:, None, :]).reshape(B, -1)
    return state


def qlayer_reference(x, U, A):
    psi0 = angle_embed_state(x).astype(jnp.complex64)
    psi = psi0 @ jnp.asarray(U.T, dtype=jnp.complex64)    # (B, D)
    Y = jnp.asarray(1j * A, dtype=jnp.complex64)          # (n, D, D)
    ypsi = jnp.einsum("ist,bt->bis", Y, psi)
    e = jnp.einsum("bs,bis->bi", jnp.conj(psi), ypsi)
    return jnp.real(e).astype(jnp.float32)


# --------------------------------------- main -------------------------------------------

if __name__ == "__main__":
    key = jax.random.PRNGKey(0)
    kx, kw = jax.random.split(key)

    B = 8
    x = jax.random.uniform(kx, (B, NUM_QUBITS), jnp.float32,
                           minval=-math.pi, maxval=math.pi)
    # TorchLayer default init for 'weights': uniform(0, 2*pi), shape (L, n, 3)
    weights = jax.random.uniform(kw, (NUM_QREPS, NUM_QUBITS, 3), jnp.float32,
                                 minval=0.0, maxval=2.0 * math.pi)

    cmask, smask, sgn, G, M = build_qlayer_constants(weights)

    out = jax.block_until_ready(qlayer_forward(x, cmask, smask, sgn, G, M))

    assert out.shape == (B, NUM_QUBITS) and out.dtype == jnp.float32
    assert bool(jnp.all(jnp.isfinite(out)))
    assert bool(jnp.all(jnp.abs(out) <= 1.0 + 1e-4))      # expvals of Pauli-Y

    U = build_sel_unitary(np.asarray(weights, dtype=np.float64), NUM_QUBITS)
    A = build_pauli_y_antisym(NUM_QUBITS)
    ref = qlayer_reference(x, U, A)
    np.testing.assert_allclose(np.asarray(out), np.asarray(ref), atol=1e-4, rtol=1e-4)

    print("KERNEL_OK")
</pallas_src>

<mosaic_0001>
module attributes {stable_mosaic.version = 11 : i64} {
  func.func @qlayer_kernel(%arg0: i32, %arg1: memref<8x4xf32, #tpu.memory_space<vmem>>, %arg2: memref<4x32xf32, #tpu.memory_space<vmem>>, %arg3: memref<4x32xf32, #tpu.memory_space<vmem>>, %arg4: memref<1x32xf32, #tpu.memory_space<vmem>>, %arg5: memref<32x128xf32, #tpu.memory_space<vmem>>, %arg6: memref<128x4xf32, #tpu.memory_space<vmem>>, %arg7: memref<8x4xf32, #tpu.memory_space<vmem>>) attributes {dimension_semantics = [#tpu.dimension_semantics<parallel>], iteration_bounds = array<i64: 1>, scalar_prefetch = 0 : i64, scratch_operands = 0 : i64, tpu.core_type = #tpu.core_type<tc>, window_params = [{transform_indices = @transform_0, window_bounds = array<i64: 8, 4>}, {pipeline_mode = #tpu.pipeline_mode<synchronous>, transform_indices = @transform_1, window_bounds = array<i64: 4, 32>}, {pipeline_mode = #tpu.pipeline_mode<synchronous>, transform_indices = @transform_2, window_bounds = array<i64: 4, 32>}, {pipeline_mode = #tpu.pipeline_mode<synchronous>, transform_indices = @transform_3, window_bounds = array<i64: 1, 32>}, {pipeline_mode = #tpu.pipeline_mode<synchronous>, transform_indices = @transform_4, window_bounds = array<i64: 32, 128>}, {pipeline_mode = #tpu.pipeline_mode<synchronous>, transform_indices = @transform_5, window_bounds = array<i64: 128, 4>}, {transform_indices = @transform_6, window_bounds = array<i64: 8, 4>}]} {
    %c0 = arith.constant 0 : index
    %c0_0 = arith.constant 0 : index
    %0 = vector.load %arg1[%c0, %c0_0] : memref<8x4xf32, #tpu.memory_space<vmem>>, vector<8x4xf32>
    %cst = arith.constant 5.000000e-01 : f32
    %1 = vector.broadcast %cst : f32 to vector<8x4xf32>
    %2 = arith.mulf %1, %0 : vector<8x4xf32>
    %3 = math.cos %2 : vector<8x4xf32>
    %4 = math.sin %2 : vector<8x4xf32>
    %5 = vector.extract_strided_slice %3 {offsets = [0, 0], sizes = [8, 1], strides = [1, 1]} : vector<8x4xf32> to vector<8x1xf32>
    %6 = vector.extract_strided_slice %4 {offsets = [0, 0], sizes = [8, 1], strides = [1, 1]} : vector<8x4xf32> to vector<8x1xf32>
    %c0_1 = arith.constant 0 : index
    %c0_2 = arith.constant 0 : index
    %7 = vector.load %arg2[%c0_1, %c0_2] : memref<4x32xf32, #tpu.memory_space<vmem>>, vector<1x32xf32>
    %8 = vector.broadcast %5 : vector<8x1xf32> to vector<8x32xf32>
    %9 = vector.broadcast %7 : vector<1x32xf32> to vector<8x32xf32>
    %10 = arith.mulf %8, %9 : vector<8x32xf32>
    %c0_3 = arith.constant 0 : index
    %c0_4 = arith.constant 0 : index
    %11 = vector.load %arg3[%c0_3, %c0_4] : memref<4x32xf32, #tpu.memory_space<vmem>>, vector<1x32xf32>
    %12 = vector.broadcast %6 : vector<8x1xf32> to vector<8x32xf32>
    %13 = vector.broadcast %11 : vector<1x32xf32> to vector<8x32xf32>
    %14 = arith.mulf %12, %13 : vector<8x32xf32>
    %15 = arith.addf %10, %14 : vector<8x32xf32>
    %16 = vector.extract_strided_slice %3 {offsets = [0, 1], sizes = [8, 1], strides = [1, 1]} : vector<8x4xf32> to vector<8x1xf32>
    %17 = vector.extract_strided_slice %4 {offsets = [0, 1], sizes = [8, 1], strides = [1, 1]} : vector<8x4xf32> to vector<8x1xf32>
    %c1 = arith.constant 1 : index
    %c0_5 = arith.constant 0 : index
    %18 = vector.load %arg2[%c1, %c0_5] : memref<4x32xf32, #tpu.memory_space<vmem>>, vector<1x32xf32>
    %19 = vector.broadcast %16 : vector<8x1xf32> to vector<8x32xf32>
    %20 = vector.broadcast %18 : vector<1x32xf32> to vector<8x32xf32>
    %21 = arith.mulf %19, %20 : vector<8x32xf32>
    %c1_6 = arith.constant 1 : index
    %c0_7 = arith.constant 0 : index
    %22 = vector.load %arg3[%c1_6, %c0_7] : memref<4x32xf32, #tpu.memory_space<vmem>>, vector<1x32xf32>
    %23 = vector.broadcast %17 : vector<8x1xf32> to vector<8x32xf32>
    %24 = vector.broadcast %22 : vector<1x32xf32> to vector<8x32xf32>
    %25 = arith.mulf %23, %24 : vector<8x32xf32>
    %26 = arith.addf %21, %25 : vector<8x32xf32>
    %27 = vector.extract_strided_slice %3 {offsets = [0, 2], sizes = [8, 1], strides = [1, 1]} : vector<8x4xf32> to vector<8x1xf32>
    %28 = vector.extract_strided_slice %4 {offsets = [0, 2], sizes = [8, 1], strides = [1, 1]} : vector<8x4xf32> to vector<8x1xf32>
    %c2 = arith.constant 2 : index
    %c0_8 = arith.constant 0 : index
    %29 = vector.load %arg2[%c2, %c0_8] : memref<4x32xf32, #tpu.memory_space<vmem>>, vector<1x32xf32>
    %30 = vector.broadcast %27 : vector<8x1xf32> to vector<8x32xf32>
    %31 = vector.broadcast %29 : vector<1x32xf32> to vector<8x32xf32>
    %32 = arith.mulf %30, %31 : vector<8x32xf32>
    %c2_9 = arith.constant 2 : index
    %c0_10 = arith.constant 0 : index
    %33 = vector.load %arg3[%c2_9, %c0_10] : memref<4x32xf32, #tpu.memory_space<vmem>>, vector<1x32xf32>
    %34 = vector.broadcast %28 : vector<8x1xf32> to vector<8x32xf32>
    %35 = vector.broadcast %33 : vector<1x32xf32> to vector<8x32xf32>
    %36 = arith.mulf %34, %35 : vector<8x32xf32>
    %37 = arith.addf %32, %36 : vector<8x32xf32>
    %38 = vector.extract_strided_slice %3 {offsets = [0, 3], sizes = [8, 1], strides = [1, 1]} : vector<8x4xf32> to vector<8x1xf32>
    %39 = vector.extract_strided_slice %4 {offsets = [0, 3], sizes = [8, 1], strides = [1, 1]} : vector<8x4xf32> to vector<8x1xf32>
    %c3 = arith.constant 3 : index
    %c0_11 = arith.constant 0 : index
    %40 = vector.load %arg2[%c3, %c0_11] : memref<4x32xf32, #tpu.memory_space<vmem>>, vector<1x32xf32>
    %41 = vector.broadcast %38 : vector<8x1xf32> to vector<8x32xf32>
    %42 = vector.broadcast %40 : vector<1x32xf32> to vector<8x32xf32>
    %43 = arith.mulf %41, %42 : vector<8x32xf32>
    %c3_12 = arith.constant 3 : index
    %c0_13 = arith.constant 0 : index
    %44 = vector.load %arg3[%c3_12, %c0_13] : memref<4x32xf32, #tpu.memory_space<vmem>>, vector<1x32xf32>
    %45 = vector.broadcast %39 : vector<8x1xf32> to vector<8x32xf32>
    %46 = vector.broadcast %44 : vector<1x32xf32> to vector<8x32xf32>
    %47 = arith.mulf %45, %46 : vector<8x32xf32>
    %48 = arith.addf %43, %47 : vector<8x32xf32>
    %49 = arith.mulf %15, %26 : vector<8x32xf32>
    %50 = arith.mulf %49, %37 : vector<8x32xf32>
    %51 = arith.mulf %50, %48 : vector<8x32xf32>
    %c0_14 = arith.constant 0 : index
    %c0_15 = arith.constant 0 : index
    %52 = vector.load %arg4[%c0_14, %c0_15] : memref<1x32xf32, #tpu.memory_space<vmem>>, vector<1x32xf32>
    %53 = vector.broadcast %52 : vector<1x32xf32> to vector<8x32xf32>
    %54 = arith.mulf %51, %53 : vector<8x32xf32>
    %c0_16 = arith.constant 0 : index
    %c0_17 = arith.constant 0 : index
    %55 = vector.load %arg5[%c0_16, %c0_17] : memref<32x128xf32, #tpu.memory_space<vmem>>, vector<32x128xf32>
    %cst_18 = arith.constant dense<0.000000e+00> : vector<8x128xf32>
    %56 = tpu.matmul %54, %55, %cst_18 {dimension_numbers = #tpu.dot_dimension_numbers<[1], [0], [0], [1], [0, 0, 1, 1], [], []>} : vector<8x32xf32>, vector<32x128xf32>, vector<8x128xf32> -> vector<8x128xf32>
    %57 = tpu.concatenate %54, %54, %54, %54 in 1 : vector<8x32xf32>, vector<8x32xf32>, vector<8x32xf32>, vector<8x32xf32> -> vector<8x128xf32>
    %58 = arith.mulf %56, %57 : vector<8x128xf32>
    %c0_19 = arith.constant 0 : index
    %c0_20 = arith.constant 0 : index
    %59 = vector.load %arg6[%c0_19, %c0_20] : memref<128x4xf32, #tpu.memory_space<vmem>>, vector<128x4xf32>
    %cst_21 = arith.constant dense<0.000000e+00> : vector<8x4xf32>
    %60 = tpu.matmul %58, %59, %cst_21 {dimension_numbers = #tpu.dot_dimension_numbers<[1], [0], [0], [1], [0, 0, 1, 1], [], []>} : vector<8x128xf32>, vector<128x4xf32>, vector<8x4xf32> -> vector<8x4xf32>
    %c0_22 = arith.constant 0 : index
    %c0_23 = arith.constant 0 : index
    %61 = vector.load %arg7[%c0_22, %c0_23] : memref<8x4xf32, #tpu.memory_space<vmem>>, vector<8x4xf32>
    tpu.vector_store %arg7[%c0_22, %c0_23], %60 {strides = array<i32>} : memref<8x4xf32, #tpu.memory_space<vmem>>, vector<8x4xf32>,
    return
  }
  func.func @transform_0(%arg0: i32) -> (i32, i32) {
    %c0_i32 = arith.constant 0 : i32
    %c0_i32_0 = arith.constant 0 : i32
    return %arg0, %c0_i32 : i32, i32
  }
  func.func @transform_1(%arg0: i32) -> (i32, i32) {
    %c0_i32 = arith.constant 0 : i32
    %c0_i32_0 = arith.constant 0 : i32
    %c0_i32_1 = arith.constant 0 : i32
    return %c0_i32, %c0_i32_0 : i32, i32
  }
  func.func @transform_2(%arg0: i32) -> (i32, i32) {
    %c0_i32 = arith.constant 0 : i32
    %c0_i32_0 = arith.constant 0 : i32
    %c0_i32_1 = arith.constant 0 : i32
    return %c0_i32, %c0_i32_0 : i32, i32
  }
  func.func @transform_3(%arg0: i32) -> (i32, i32) {
    %c0_i32 = arith.constant 0 : i32
    %c0_i32_0 = arith.constant 0 : i32
    %c0_i32_1 = arith.constant 0 : i32
    return %c0_i32, %c0_i32_0 : i32, i32
  }
  func.func @transform_4(%arg0: i32) -> (i32, i32) {
    %c0_i32 = arith.constant 0 : i32
    %c0_i32_0 = arith.constant 0 : i32
    %c0_i32_1 = arith.constant 0 : i32
    return %c0_i32, %c0_i32_0 : i32, i32
  }
  func.func @transform_5(%arg0: i32) -> (i32, i32) {
    %c0_i32 = arith.constant 0 : i32
    %c0_i32_0 = arith.constant 0 : i32
    %c0_i32_1 = arith.constant 0 : i32
    return %c0_i32, %c0_i32_0 : i32, i32
  }
  func.func @transform_6(%arg0: i32) -> (i32, i32) {
    %c0_i32 = arith.constant 0 : i32
    %c0_i32_0 = arith.constant 0 : i32
    return %arg0, %c0_i32 : i32, i32
  }
}

</mosaic_0001>

<llo_original>
// kernel: qlayer_forward.1
$region0: #{qlayer_forward.1}
  #allocation0 [shape = 'u32[]', space=smem, size = 0x4, offset = 0x4, fixed_abs, tag = 'smem constant byte address 0x4 - core index']
  #allocation1 [shape = 'u32[144,128]{1,0:T(1,128)}', space=vmem, size = 0x12000, scoped, tag = 'internal scratch']
  %s0 = inlined_call_operand.vmem [shape: f32[8,4], index: 0, kind: input, shape index: {}]
  %s1 = inlined_call_operand.vmem [shape: f32[4,32], index: 1, kind: input, shape index: {}]
  %s2 = inlined_call_operand.vmem [shape: f32[4,32], index: 2, kind: input, shape index: {}]
  %s3 = inlined_call_operand.vmem [shape: f32[1,32], index: 3, kind: input, shape index: {}]
  %s4 = inlined_call_operand.vmem [shape: f32[32,128], index: 4, kind: input, shape index: {}]
  %s5 = inlined_call_operand.vmem [shape: f32[128,4], index: 5, kind: input, shape index: {}]
  %s6 = inlined_call_operand.vmem [shape: f32[8,4], index: 6, kind: output, shape index: {}]
  %s7 = sld [smem:[#allocation0]]
  $region34: #{qlayer_forward.1} parent=0
    _
  %s9 = ssub.s32 1, %s7
  %s10 = scalar_select 0, %s9, %s7
  // Predicated region
  $region2: #{qlayer_forward.1} parent=0 // pred_check
    _
  $region3: #{qlayer_forward.1} parent=0 // pred_check_branch
    %12 = sbr.rel (0) target = $region5
  $region4: #{qlayer_forward.1} parent=0 // pred_region
    _
  $region5: #{qlayer_forward.1} parent=0 // pred_fallthru
    _
  // Predicated region
  $region6: #{qlayer_forward.1} parent=0 // pred_check
    _
  $region7: #{qlayer_forward.1} parent=0 // pred_check_branch
    %14 = sbr.rel (0) target = $region9
  $region8: #{qlayer_forward.1} parent=0 // pred_region
    _
  $region9: #{qlayer_forward.1} parent=0 // pred_fallthru
    _
  // Predicated region
  $region10: #{qlayer_forward.1} parent=0 // pred_check
    _
  $region11: #{qlayer_forward.1} parent=0 // pred_check_branch
    %16 = sbr.rel (0) target = $region13
  $region12: #{qlayer_forward.1} parent=0 // pred_region
    _
  $region13: #{qlayer_forward.1} parent=0 // pred_fallthru
    _
  // Predicated region
  $region14: #{qlayer_forward.1} parent=0 // pred_check
    _
  $region15: #{qlayer_forward.1} parent=0 // pred_check_branch
    %18 = sbr.rel (0) target = $region17
  $region16: #{qlayer_forward.1} parent=0 // pred_region
    _
  $region17: #{qlayer_forward.1} parent=0 // pred_fallthru
    _
  // Predicated region
  $region18: #{qlayer_forward.1} parent=0 // pred_check
    _
  $region19: #{qlayer_forward.1} parent=0 // pred_check_branch
    %20 = sbr.rel (0) target = $region21
  $region20: #{qlayer_forward.1} parent=0 // pred_region
    _
  $region21: #{qlayer_forward.1} parent=0 // pred_fallthru
    _
  // Predicated region
  $region22: #{qlayer_forward.1} parent=0 // pred_check
    _
  $region23: #{qlayer_forward.1} parent=0 // pred_check_branch
    %22 = sbr.rel (0) target = $region25
  $region24: #{qlayer_forward.1} parent=0 // pred_region
    _
  $region25: #{qlayer_forward.1} parent=0 // pred_fallthru
    _
  %v23 = vld [vmem:[%s0] sm:$0xff]
  %v24 = vmul.f32 %v23, 0.5
  %v25 = vand.u32 2147483647, %v24
  %vm26 = vcmp.le.f32.partialorder %v25, 0.7853982
  %vm27 = vcmp.lt.s32.totalorder %v24, 0
  %v28 = vand.u32 %v24, 2139095040
  %v29 = vshrl.u32 %v28, 23
  %v30 = vsub.s32 %v29, 127
  %v31 = vand.u32 2147483647, %v24
  %v32 = vand.u32 %v31, 8388607
  %v33 = vor.u32 %v32, 8388608
  %v34 = vsub.s32 0, %v33
  %v35 = vadd.s32 %v30, 1
  %vm36 = vcmp.gt.s32.totalorder %v35, 0
  %v37 = vsel %vm36, %v35, 0
  %v38 = vshrl.u32 %v37, 5
  %v39 = vand.u32 %v37, 31
  %v40 = vsub.s32 32, %v39
  %v41 = vshrl.u32 683565275, %v40
  %v42 = vshll.u32 683565275, %v39
  %v43 = vshrl.u32 2475754826, %v40
  %v44 = vor.u32 %v42, %v43
  %v45 = vshll.u32 2475754826, %v39
  %v46 = vshrl.u32 2131351028, %v40
  %v47 = vor.u32 %v45, %v46
  %v48 = vshll.u32 2131351028, %v39
  %v49 = vshrl.u32 2102212464, %v40
  %v50 = vor.u32 %v48, %v49
  %v51 = vshll.u32 2102212464, %v39
  %v52 = vshrl.u32 920167782, %v40
  %v53 = vor.u32 %v51, %v52
  %v54 = vshll.u32 920167782, %v39
  %v55 = vshrl.u32 1326507024, %v40
  %v56 = vor.u32 %v54, %v55
  %vm57 = vcmp.lt.s32.totalorder %v38, 1
  %vm58 = vcmp.lt.s32.totalorder %v38, 2
  %vm59 = vcmp.lt.s32.totalorder %v38, 3
  %vm60 = vcmp.lt.s32.totalorder %v38, 4
  %v61 = vsel %vm57, %v41, %v44
  %v62 = vsel %vm60, %v50, 2102212464
  %v63 = vsel %vm59, %v47, %v62
  %v64 = vsel %vm58, %v61, %v63
  %v65 = vsel %vm57, %v44, %v47
  %v66 = vsel %vm60, %v53, 920167782
  %v67 = vsel %vm59, %v50, %v66
  %v68 = vsel %vm58, %v65, %v67
  %v69 = vsel %vm57, %v47, %v50
  %v70 = vsel %vm60, %v56, 1326507024
  %v71 = vsel %vm59, %v53, %v70
  %v72 = vsel %vm58, %v69, %v71
  %v73 = vshll.u32 %v33, 8
  %v74 = vmul.u32.u64.compose %v73, %v72
  %v75 = vextract.low.u32 %v74
  %v76 = vextract.high.u32 %v74
  %v77 = vmul.u32.u64.compose %v73, %v68
  %v78 = vextract.low.u32 %v77
  %v79 = vextract.high.u32 %v77
  %v80 = vmul.u32 %v73, %v64
  %v81 = vadd.s32 %v76, %v78
  %vm82 = vc.u32 %v76, %v78
  %v83 = vadd.s32 %v79, 1
  %v84 = vsel %vm82, %v83, %v79
  %v85 = vadd.s32 %v80, %v84
  %v86 = vadd.s32 %v85, 536870912
  %v87 = vshrl.u32 %v86, 30
  %v88 = vshll.u32 %v87, 30
  %v89 = vsub.s32 %v85, %v88
  %vm90 = vcmp.lt.s32.totalorder %v89, 0
  %v91 = vsub.s32 0, %v89
  %v92 = vsel %vm90, %v91, %v89
  %v93 = vclz %v92
  %v94 = vsub.s32 %v93, 2
  %vm95 = vcmp.gt.s32.totalorder 0, %v94
  %v96 = vsel %vm95, 0, %v94
  %v97 = vsub.s32 32, %v96
  %v98 = vshll.u32 %v89, %v96
  %v99 = vshrl.u32 %v81, %v97
  %v100 = vor.u32 %v98, %v99
  %v101 = vsub.s32 4294967266, %v96
  %v102 = vadd.s32 %v101, 127
  %v103 = vshll.u32 %v102, 23
  %v104 = vor.u32 4788187, %v103
  %v105 = vand.u32 2147483647, %v104
  %v107 = vcvt.s32.f32 %v100
  %v108 = vmul.f32 %v107, %v105
  %v109 = vxor.u32 %v108, 2147483648
  %v110 = vsel %vm27, %v109, %v108
  %v111 = vsub.s32 4, %v87
  %v112 = vsel %vm27, %v111, %v87
  %v113 = vsel %vm26, %v24, %v110
  %v114 = vsel %vm26, 0, %v112
  %v115 = vcosq.f32.pop %v113
  %v116 = vsinq.f32.pop %v113
  %vm117 = vweird.f32 %v24
  %v118 = vand.u32 %v114, 3
  %vm119 = vcmp.lt.s32.totalorder %v118, 2
  %vm120 = vcmp.eq.s32.totalorder %v118, 0
  %v121 = vxor.u32 %v116, 2147483648
  %v122 = vsel %vm120, %v115, %v121
  %vm123 = vcmp.eq.s32.totalorder %v118, 2
  %v124 = vxor.u32 %v115, 2147483648
  %v125 = vsel %vm123, %v124, %v116
  %v126 = vsel %vm119, %v122, %v125
  %v127 = vsel %vm117, nan, %v126
  %v128 = vand.u32 2147483647, %v24
  %vm129 = vcmp.le.f32.partialorder %v128, 0.7853982
  %vm130 = vcmp.lt.s32.totalorder %v24, 0
  %v131 = vand.u32 %v24, 2139095040
  %v132 = vshrl.u32 %v131, 23
  %v133 = vsub.s32 %v132, 127
  %v134 = vand.u32 2147483647, %v24
  %v135 = vand.u32 %v134, 8388607
  %v136 = vor.u32 %v135, 8388608
  %v137 = vsub.s32 0, %v136
  %v138 = vadd.s32 %v133, 1
  %vm139 = vcmp.gt.s32.totalorder %v138, 0
  %v140 = vsel %vm139, %v138, 0
  %v141 = vshrl.u32 %v140, 5
  %v142 = vand.u32 %v140, 31
  %v143 = vsub.s32 32, %v142
  %v144 = vshrl.u32 683565275, %v143
  %v145 = vshll.u32 683565275, %v142
  %v146 = vshrl.u32 2475754826, %v143
  %v147 = vor.u32 %v145, %v146
  %v148 = vshll.u32 2475754826, %v142
  %v149 = vshrl.u32 2131351028, %v143
  %v150 = vor.u32 %v148, %v149
  %v151 = vshll.u32 2131351028, %v142
  %v152 = vshrl.u32 2102212464, %v143
  %v153 = vor.u32 %v151, %v152
  %v154 = vshll.u32 2102212464, %v142
  %v155 = vshrl.u32 920167782, %v143
  %v156 = vor.u32 %v154, %v155
  %v157 = vshll.u32 920167782, %v142
  %v158 = vshrl.u32 1326507024, %v143
  %v159 = vor.u32 %v157, %v158
  %vm160 = vcmp.lt.s32.totalorder %v141, 1
  %vm161 = vcmp.lt.s32.totalorder %v141, 2
  %vm162 = vcmp.lt.s32.totalorder %v141, 3
  %vm163 = vcmp.lt.s32.totalorder %v141, 4
  %v164 = vsel %vm160, %v144, %v147
  %v165 = vsel %vm163, %v153, 2102212464
  %v166 = vsel %vm162, %v150, %v165
  %v167 = vsel %vm161, %v164, %v166
  %v168 = vsel %vm160, %v147, %v150
  %v169 = vsel %vm163, %v156, 920167782
  %v170 = vsel %vm162, %v153, %v169
  %v171 = vsel %vm161, %v168, %v170
  %v172 = vsel %vm160, %v150, %v153
  %v173 = vsel %vm163, %v159, 1326507024
  %v174 = vsel %vm162, %v156, %v173
  %v175 = vsel %vm161, %v172, %v174
  %v176 = vshll.u32 %v136, 8
  %v177 = vmul.u32.u64.compose %v176, %v175
  %v178 = vextract.low.u32 %v177
  %v179 = vextract.high.u32 %v177
  %v180 = vmul.u32.u64.compose %v176, %v171
  %v181 = vextract.low.u32 %v180
  %v182 = vextract.high.u32 %v180
  %v183 = vmul.u32 %v176, %v167
  %v184 = vadd.s32 %v179, %v181
  %vm185 = vc.u32 %v179, %v181
  %v186 = vadd.s32 %v182, 1
  %v187 = vsel %vm185, %v186, %v182
  %v188 = vadd.s32 %v183, %v187
  %v189 = vadd.s32 %v188, 536870912
  %v190 = vshrl.u32 %v189, 30
  %v191 = vshll.u32 %v190, 30
  %v192 = vsub.s32 %v188, %v191
  %vm193 = vcmp.lt.s32.totalorder %v192, 0
  %v194 = vsub.s32 0, %v192
  %v195 = vsel %vm193, %v194, %v192
  %v196 = vclz %v195
  %v197 = vsub.s32 %v196, 2
  %vm198 = vcmp.gt.s32.totalorder 0, %v197
  %v199 = vsel %vm198, 0, %v197
  %v200 = vsub.s32 32, %v199
  %v201 = vshll.u32 %v192, %v199
  %v202 = vshrl.u32 %v184, %v200
  %v203 = vor.u32 %v201, %v202
  %v204 = vsub.s32 4294967266, %v199
  %v205 = vadd.s32 %v204, 127
  %v206 = vshll.u32 %v205, 23
  %v207 = vor.u32 4788187, %v206
  %v208 = vand.u32 2147483647, %v207
  %v210 = vcvt.s32.f32 %v203
  %v211 = vmul.f32 %v210, %v208
  %v212 = vxor.u32 %v211, 2147483648
  %v213 = vsel %vm130, %v212, %v211
  %v214 = vsub.s32 4, %v190
  %v215 = vsel %vm130, %v214, %v190
  %v216 = vsel %vm129, %v24, %v213
  %v217 = vsel %vm129, 0, %v215
  %v218 = vcosq.f32.pop %v216
  %v219 = vsinq.f32.pop %v216
  %vm220 = vweird.f32 %v24
  %v221 = vadd.s32 %v217, 3
  %v222 = vand.u32 %v221, 3
  %vm223 = vcmp.lt.s32.totalorder %v222, 2
  %vm224 = vcmp.eq.s32.totalorder %v222, 0
  %v225 = vxor.u32 %v219, 2147483648
  %v226 = vsel %vm224, %v218, %v225
  %vm227 = vcmp.eq.s32.totalorder %v222, 2
  %v228 = vxor.u32 %v218, 2147483648
  %v229 = vsel %vm227, %v228, %v219
  %v230 = vsel %vm223, %v226, %v229
  %v231 = vsel %vm220, nan, %v230
  %v232 = vld [vmem:[%s1] sm:$0x1]
  %234 = vset.pattern.permute.xlu0 0
  %235 = vperm.xlu0 %234, %v127
  %v236 = vpop.permute.xlu0 %235
  %v238 = vlaneseq
  %v239 = vshrl.u32 %v238, 7
  %v240 = vsub.s32 0, %v239
  %v241 = vrot.slane %v232, %v240
  %v242 = vmul.f32 %v236, %v241
  %v243 = vld [vmem:[%s2] sm:$0x1]
  %245 = vset.pattern.permute.xlu0 0
  %246 = vperm.xlu0 %245, %v231
  %v247 = vpop.permute.xlu0 %246
  %v249 = vlaneseq
  %v250 = vshrl.u32 %v249, 7
  %v251 = vsub.s32 0, %v250
  %v252 = vrot.slane %v243, %v251
  %v253 = vmul.f32 %v247, %v252
  %v254 = vadd.f32 %v242, %v253
  %v255 = vld [vmem:[%s1 + $0x1] sm:$0x1]
  %256 = vset.pattern.permute.xlu0 1
  %257 = vperm.xlu0 %256, %v127
  %v258 = vpop.permute.xlu0 %257
  %v260 = vlaneseq
  %v261 = vshrl.u32 %v260, 7
  %v262 = vsub.s32 0, %v261
  %v263 = vrot.slane %v255, %v262
  %v264 = vmul.f32 %v258, %v263
  %v265 = vld [vmem:[%s2 + $0x1] sm:$0x1]
  %266 = vset.pattern.permute.xlu0 1
  %267 = vperm.xlu0 %266, %v231
  %v268 = vpop.permute.xlu0 %267
  %v270 = vlaneseq
  %v271 = vshrl.u32 %v270, 7
  %v272 = vsub.s32 0, %v271
  %v273 = vrot.slane %v265, %v272
  %v274 = vmul.f32 %v268, %v273
  %v275 = vadd.f32 %v264, %v274
  %v276 = vld [vmem:[%s1 + $0x2] sm:$0x1]
  %277 = vset.pattern.permute.xlu0 2
  %278 = vperm.xlu0 %277, %v127
  %v279 = vpop.permute.xlu0 %278
  %v281 = vlaneseq
  %v282 = vshrl.u32 %v281, 7
  %v283 = vsub.s32 0, %v282
  %v284 = vrot.slane %v276, %v283
  %v285 = vmul.f32 %v279, %v284
  %v286 = vld [vmem:[%s2 + $0x2] sm:$0x1]
  %287 = vset.pattern.permute.xlu0 2
  %288 = vperm.xlu0 %287, %v231
  %v289 = vpop.permute.xlu0 %288
  %v291 = vlaneseq
  %v292 = vshrl.u32 %v291, 7
  %v293 = vsub.s32 0, %v292
  %v294 = vrot.slane %v286, %v293
  %v295 = vmul.f32 %v289, %v294
  %v296 = vadd.f32 %v285, %v295
  %v297 = vld [vmem:[%s1 + $0x3] sm:$0x1]
  %298 = vset.pattern.permute.xlu0 3
  %299 = vperm.xlu0 %298, %v127
  %v300 = vpop.permute.xlu0 %299
  %v302 = vlaneseq
  %v303 = vshrl.u32 %v302, 7
  %v304 = vsub.s32 0, %v303
  %v305 = vrot.slane %v297, %v304
  %v306 = vmul.f32 %v300, %v305
  %v307 = vld [vmem:[%s2 + $0x3] sm:$0x1]
  %308 = vset.pattern.permute.xlu0 3
  %309 = vperm.xlu0 %308, %v231
  %v310 = vpop.permute.xlu0 %309
  %v312 = vlaneseq
  %v313 = vshrl.u32 %v312, 7
  %v314 = vsub.s32 0, %v313
  %v315 = vrot.slane %v307, %v314
  %v316 = vmul.f32 %v310, %v315
  %v317 = vadd.f32 %v306, %v316
  %v318 = vmul.f32 %v254, %v275
  %v319 = vmul.f32 %v318, %v296
  %v320 = vmul.f32 %v319, %v317
  %v321 = vld [vmem:[%s3] sm:$0x1]
  %v323 = vlaneseq
  %v324 = vshrl.u32 %v323, 7
  %v325 = vsub.s32 0, %v324
  %v326 = vrot.slane %v321, %v325
  %v328 = vmul.f32 %v320, %v326
  %v329 = vld [vmem:[%s4] sm:$0xff]
  %v330 = vld [vmem:[%s4 + $0x8] sm:$0xff]
  %v331 = vld [vmem:[%s4 + $0x10] sm:$0xff]
  %v332 = vld [vmem:[%s4 + $0x18] sm:$0xff]
  %vm333 = vcmask 261120
  %v335 = vsel %vm333, %v328, 0
  %337 = vmatprep.subr.mxu0 0.0
  %338 = vmatpush1.msra.mxu0 %v329
  %339 = vmatprep.subr.mxu0 0.0
  %340 = vmatpush1.msra.mxu0 %v330
  %341 = vmatprep.subr.mxu0 0.0
  %342 = vmatpush1.msra.mxu0 %v331
  %343 = vmatprep.subr.mxu0 0.0
  %344 = vmatpush1.msra.mxu0 %v332
  %345 = vmatprep.subr.mxu0 0.0
  %346 = vmatpush1.msra.mxu0 0.0
  %347 = vmatprep.subr.mxu0 0.0
  %348 = vmatpush1.msra.mxu0 0.0
  %349 = vmatprep.subr.mxu0 0.0
  %350 = vmatpush1.msra.mxu0 0.0
  %351 = vmatprep.subr.mxu0 0.0
  %352 = vmatpush1.msra.mxu0 0.0
  %353 = vmatprep.subr.mxu0 0.0
  %354 = vmatpush1.msra.mxu0 0.0
  %355 = vmatprep.subr.mxu0 0.0
  %356 = vmatpush1.msra.mxu0 0.0
  %357 = vmatprep.subr.mxu0 0.0
  %358 = vmatpush1.msra.mxu0 0.0
  %359 = vmatprep.subr.mxu0 0.0
  %360 = vmatpush1.msra.mxu0 0.0
  %361 = vmatprep.subr.mxu0 0.0
  %362 = vmatpush1.msra.mxu0 0.0
  %363 = vmatprep.subr.mxu0 0.0
  %364 = vmatpush1.msra.mxu0 0.0
  %365 = vmatprep.subr.mxu0 0.0
  %366 = vmatpush1.msra.mxu0 0.0
  %367 = vmatprep.subr.mxu0 0.0
  %368 = vmatpush1.msra.mxu0 0.0
  %369 = vmatprep.subr.mxu0 0.0
  %370 = vmatpush1.msra.mxu0 0.0
  %371 = vmatprep.subr.mxu0 0.0
  %372 = vmatpush1.msra.mxu0 0.0
  %373 = vmatprep.subr.mxu0 0.0
  %374 = vmatpush1.msra.mxu0 0.0
  %375 = vmatprep.subr.mxu0 0.0
  %376 = vmatpush1.msra.mxu0 0.0
  %377 = vmatprep.subr.mxu0 0.0
  %378 = vmatpush1.msra.mxu0 0.0
  %379 = vmatprep.subr.mxu0 0.0
  %380 = vmatpush1.msra.mxu0 0.0
  %381 = vmatprep.subr.mxu0 0.0
  %382 = vmatpush1.msra.mxu0 0.0
  %383 = vmatprep.subr.mxu0 0.0
  %384 = vmatpush1.msra.mxu0 0.0
  %385 = vmatprep.subr.mxu0 0.0
  %386 = vmatpush1.msra.mxu0 0.0
  %387 = vmatprep.subr.mxu0 0.0
  %388 = vmatpush1.msra.mxu0 0.0
  %389 = vmatprep.subr.mxu0 0.0
  %390 = vmatpush1.msra.mxu0 0.0
  %391 = vmatprep.subr.mxu0 0.0
  %392 = vmatpush1.msra.mxu0 0.0
  %393 = vmatprep.subr.mxu0 0.0
  %394 = vmatpush1.msra.mxu0 0.0
  %395 = vmatprep.subr.mxu0 0.0
  %396 = vmatpush1.msra.mxu0 0.0
  %397 = vmatprep.subr.mxu0 0.0
  %398 = vmatpush1.msra.mxu0 0.0
  %399 = vmatprep.subr.mxu0 0.0
  %400 = vmatpush1.msra.mxu0 0.0
  %401 = vmatprep.mubr.f32.mxu0 0.0
  %402 = vmatmul.mubr.f32.gmra.mrb[0].mxu0 %v335
  %v403 = vpop.f32.mrb[0].mxu0
  %v404 = vadd.f32 0.0, %v403
  %v405 = vpop.f32.mrb[0].mxu0
  %406 = vdwg.mxu0
  %407 = vrot.lane.b32.xlu0 %v328, 32
  %v408 = vpop.permute.xlu0 %407
  %410 = vrot.lane.b32.xlu0 %v328, 64
  %v411 = vpop.permute.xlu0 %410
  %413 = vrot.lane.b32.xlu0 %v328, 96
  %v414 = vpop.permute.xlu0 %413
  %v416 = vsel %vm333, %v328, %v408
  %vm417 = vcmask 523264
  %v418 = vsel %vm417, %v416, %v411
  %vm419 = vcmask 785408
  %v420 = vsel %vm419, %v418, %v414
  %v421 = vmul.f32 %v404, %v420
  %v422 = vld [vmem:[%s5] sm:$0xff]
  %v423 = vld [vmem:[%s5 + $0x8] sm:$0xff]
  %v424 = vld [vmem:[%s5 + $0x10] sm:$0xff]
  %v425 = vld [vmem:[%s5 + $0x18] sm:$0xff]
  %v426 = vld [vmem:[%s5 + $0x20] sm:$0xff]
  %v427 = vld [vmem:[%s5 + $0x28] sm:$0xff]
  %v428 = vld [vmem:[%s5 + $0x30] sm:$0xff]
  %v429 = vld [vmem:[%s5 + $0x38] sm:$0xff]
  %v430 = vld [vmem:[%s5 + $0x40] sm:$0xff]
  %v431 = vld [vmem:[%s5 + $0x48] sm:$0xff]
  %v432 = vld [vmem:[%s5 + $0x50] sm:$0xff]
  %v433 = vld [vmem:[%s5 + $0x58] sm:$0xff]
  %v434 = vld [vmem:[%s5 + $0x60] sm:$0xff]
  %v435 = vld [vmem:[%s5 + $0x68] sm:$0xff]
  %v436 = vld [vmem:[%s5 + $0x70] sm:$0xff]
  %v437 = vld [vmem:[%s5 + $0x78] sm:$0xff]
  %438 = vmatprep.subr.mxu0 0.0
  %439 = vmatpush1.msra.mxu0 %v422
  %440 = vmatprep.subr.mxu0 0.0
  %441 = vmatpush1.msra.mxu0 %v423
  %442 = vmatprep.subr.mxu0 0.0
  %443 = vmatpush1.msra.mxu0 %v424
  %444 = vmatprep.subr.mxu0 0.0
  %445 = vmatpush1.msra.mxu0 %v425
  %446 = vmatprep.subr.mxu0 0.0
  %447 = vmatpush1.msra.mxu0 %v426
  %448 = vmatprep.subr.mxu0 0.0
  %449 = vmatpush1.msra.mxu0 %v427
  %450 = vmatprep.subr.mxu0 0.0
  %451 = vmatpush1.msra.mxu0 %v428
  %452 = vmatprep.subr.mxu0 0.0
  %453 = vmatpush1.msra.mxu0 %v429
  %454 = vmatprep.subr.mxu0 0.0
  %455 = vmatpush1.msra.mxu0 %v430
  %456 = vmatprep.subr.mxu0 0.0
  %457 = vmatpush1.msra.mxu0 %v431
  %458 = vmatprep.subr.mxu0 0.0
  %459 = vmatpush1.msra.mxu0 %v432
  %460 = vmatprep.subr.mxu0 0.0
  %461 = vmatpush1.msra.mxu0 %v433
  %462 = vmatprep.subr.mxu0 0.0
  %463 = vmatpush1.msra.mxu0 %v434
  %464 = vmatprep.subr.mxu0 0.0
  %465 = vmatpush1.msra.mxu0 %v435
  %466 = vmatprep.subr.mxu0 0.0
  %467 = vmatpush1.msra.mxu0 %v436
  %468 = vmatprep.subr.mxu0 0.0
  %469 = vmatpush1.msra.mxu0 %v437
  %470 = vmatprep.subr.mxu0 0.0
  %471 = vmatpush1.msra.mxu0 0.0
  %472 = vmatprep.subr.mxu0 0.0
  %473 = vmatpush1.msra.mxu0 0.0
  %474 = vmatprep.subr.mxu0 0.0
  %475 = vmatpush1.msra.mxu0 0.0
  %476 = vmatprep.subr.mxu0 0.0
  %477 = vmatpush1.msra.mxu0 0.0
  %478 = vmatprep.subr.mxu0 0.0
  %479 = vmatpush1.msra.mxu0 0.0
  %480 = vmatprep.subr.mxu0 0.0
  %481 = vmatpush1.msra.mxu0 0.0
  %482 = vmatprep.subr.mxu0 0.0
  %483 = vmatpush1.msra.mxu0 0.0
  %484 = vmatprep.subr.mxu0 0.0
  %485 = vmatpush1.msra.mxu0 0.0
  %486 = vmatprep.subr.mxu0 0.0
  %487 = vmatpush1.msra.mxu0 0.0
  %488 = vmatprep.subr.mxu0 0.0
  %489 = vmatpush1.msra.mxu0 0.0
  %490 = vmatprep.subr.mxu0 0.0
  %491 = vmatpush1.msra.mxu0 0.0
  %492 = vmatprep.subr.mxu0 0.0
  %493 = vmatpush1.msra.mxu0 0.0
  %494 = vmatprep.subr.mxu0 0.0
  %495 = vmatpush1.msra.mxu0 0.0
  %496 = vmatprep.subr.mxu0 0.0
  %497 = vmatpush1.msra.mxu0 0.0
  %498 = vmatprep.subr.mxu0 0.0
  %499 = vmatpush1.msra.mxu0 0.0
  %500 = vmatprep.subr.mxu0 0.0
  %501 = vmatpush1.msra.mxu0 0.0
  %502 = vmatprep.mubr.f32.mxu0 0.0
  %503 = vmatmul.mubr.f32.gmra.mrb[0].mxu0 %v421
  %v504 = vpop.f32.mrb[0].mxu0
  %v505 = vadd.f32 0.0, %v504
  %v506 = vpop.f32.mrb[0].mxu0
  %507 = vdwg.mxu0
  %vm508 = vcmask 31744
  %509 = vst.msk [vmem:[%s6] sm:$0xff] %vm508, %v505
  // Predicated region
  $region26: #{qlayer_forward.1} parent=0 // pred_check
    _
  $region27: #{qlayer_forward.1} parent=0 // pred_check_branch
    %511 = sbr.rel (0) target = $region29
  $region28: #{qlayer_forward.1} parent=0 // pred_region
    _
  $region29: #{qlayer_forward.1} parent=0 // pred_fallthru
    _
  // Predicated region
  $region30: #{qlayer_forward.1} parent=0 // pred_check
    _
  $region31: #{qlayer_forward.1} parent=0 // pred_check_branch
    %513 = sbr.rel (0) target = $region33
  $region32: #{qlayer_forward.1} parent=0 // pred_region
    _
  $region33: #{qlayer_forward.1} parent=0 // pred_fallthru
    _

</llo_original>
